<compile_context>
chip_gen: v6e
topology: v6e:2x2x1
jax: 0.10.0
libtpu: 0.0.40
codegen_flags: <defaults>
</compile_context>

<pallas_src>
import numpy as np
import jax
import jax.numpy as jnp
from jax.experimental import pallas as pl
from jax.experimental.pallas import tpu as pltpu

INF = 100000000
RADIUS = 1.5
ALPHA = 0.25
# gamma == 2.0  (implemented as an explicit square inside the kernel)

_LANES = 128
_MAX_TILE_ROWS = 8192   # 8192x128 f32 = 4 MiB class block + 1 MiB int8 targets;
                        # double-buffered ~10 MiB total, inside 32 MiB scoped VMEM
                        # on v5e/v6e/v7x (accumulator no longer scales with tile).
_ROW_ALIGN = 32         # int8 packs 4/sublane: keep second-to-minor a multiple of 32.


def _round_up(x, m):
    return ((x + m - 1) // m) * m


# ---------------------------------------------------------------------------
# Pallas kernel: per-sample focal-loss sum over the flattened (anchors*classes) axis
# ---------------------------------------------------------------------------
def _focal_sum_kernel(p_ref, t_ref, out_ref, acc_ref):
    # p_ref / t_ref blocks: (1, tile_rows, 128); out_ref block: (1, 1, 128)
    # acc_ref scratch:      (8, 128) f32, persistent across the row-tile (k) axis
    k = pl.program_id(1)

    @pl.when(k == 0)
    def _init():
        acc_ref[...] = jnp.zeros_like(acc_ref)

    # Targets are int8 {0, 1}; -1 marks tail padding only.
    # TODO(synk): on v7x, comparing the int8 block directly (before the f32 cast)
    # shaves one VPU unpack per element; kept as f32 compares for proven lowering.
    t = t_ref[0].astype(jnp.float32)
    is_pos = t == 1.0

    # torch.clamp(classification, 1e-4, 1 - 1e-4); upcast covers optional bf16 ingress.
    p = jnp.clip(p_ref[0].astype(jnp.float32), 1e-4, 1.0 - 1e-4)

    # Single-log focal BCE.  NOTE: only valid because targets are exactly {0, 1}
    # (no soft labels).  Padded lanes (t == -1) get pt = 1 -> exactly zero loss
    # ((1-pt)^2 = 0 and log(1) = 0), so no separate masking select is needed.
    pt = jnp.where(is_pos, p, 1.0 - p)          # probability of the target class
    pt = jnp.where(t == -1.0, 1.0, pt)          # padding -> exact zero contribution
    one_m_pt = 1.0 - pt
    alpha_factor = jnp.where(is_pos, ALPHA, 1.0 - ALPHA)
    # Negative of the loss (log(pt) <= 0); accumulate with a subtract so the
    # per-element negate disappears (bit-exact vs. -log(pt)).
    neg_loss = (alpha_factor * (one_m_pt * one_m_pt)) * jnp.log(pt)

    # Fold the (tile_rows, 128) tile into a single (8, 128) vreg accumulator:
    # leading-axis fold = pure cross-vreg VALU adds; reshape is (8,128)-aligned.
    acc_ref[...] -= neg_loss.reshape(-1, 8, _LANES).sum(axis=0)

    @pl.when(k == pl.num_programs(1) - 1)
    def _finalize():
        total = jnp.sum(acc_ref[...])           # one small (8,128) XLU reduce / sample
        out_ref[...] = jnp.full(out_ref.shape, total, out_ref.dtype)


def focal_loss_sums(classifications, class_targets_i8, *, input_dtype=jnp.float32):
    """Per-batch-element sum of focal loss, computed on TPU via a lane-dense Pallas kernel.

    classifications : (B, A, C) float, already sigmoid'ed (values in (0, 1)), device array
    class_targets_i8: (B, A, C) int8 with values in {0, 1}
    input_dtype     : dtype the probability tensor is shipped to the kernel in.
                      jnp.bfloat16 halves HBM bytes of the dominant operand
                      (~1.5x on bandwidth-bound v5e/v6e, ~0.4% rel. error);
                      default f32 keeps reference numerics exactly.
    returns         : (B,) float32 sums over (A, C), on device.
    """
    B, A, C = classifications.shape
    n = A * C
    rows = pl.cdiv(n, _LANES)
    tile_rows = min(_MAX_TILE_ROWS, _round_up(rows, _ROW_ALIGN))
    rows_padded = _round_up(rows, tile_rows)
    pad = rows_padded * _LANES - n

    p_flat = classifications.reshape(B, n).astype(input_dtype)
    t_flat = class_targets_i8.reshape(B, n).astype(jnp.int8)
    if pad:
        # Pad with p = 0.5 (value irrelevant after pt:=1 fold) and t = -1 (pad marker).
        p_flat = jnp.pad(p_flat, ((0, 0), (0, pad)), constant_values=0.5)
        t_flat = jnp.pad(t_flat, ((0, 0), (0, pad)), constant_values=-1)
    p2 = p_flat.reshape(B, rows_padded, _LANES)
    t2 = t_flat.reshape(B, rows_padded, _LANES)
    n_tiles = rows_padded // tile_rows

    # TODO(synk): for tiny A*C (rows << tile_rows) several samples could be packed
    # into one block to amortize the ~0.35 us per-grid-step overhead; not done here.
    out = pl.pallas_call(
        _focal_sum_kernel,
        out_shape=jax.ShapeDtypeStruct((B, 1, _LANES), jnp.float32),
        grid=(B, n_tiles),
        in_specs=[
            pl.BlockSpec((1, tile_rows, _LANES), lambda b, k: (b, k, 0)),
            pl.BlockSpec((1, tile_rows, _LANES), lambda b, k: (b, k, 0)),
        ],
        out_specs=pl.BlockSpec((1, 1, _LANES), lambda b, k: (b, 0, 0)),
        scratch_shapes=[pltpu.VMEM((8, _LANES), jnp.float32)],
        compiler_params=pltpu.CompilerParams(
            dimension_semantics=("parallel", "arbitrary"),
            vmem_limit_bytes=32 * 1024 * 1024),
    )(p2, t2)
    return out[:, 0, 0]   # (B,) per-sample sums (stays on device)


# ---------------------------------------------------------------------------
# Host-side glue: FCOS positive-anchor assignment (data-dependent shapes)
# ---------------------------------------------------------------------------
def get_fcos_positives_np(jth_annotations, anchors_list, class_id):
    ann = jth_annotations[jth_annotations[:, 2] == class_id]
    audio_target_rate = 22050.0 / 128.0
    sizes = [[-1, 0.45608904], [0.45608904, 0.878505635], [0.878505635, 1.557724045],
             [1.557724045, 2.264785525], [2.264785525, 1000]]

    pos_parts, norm_parts, lev_parts = [], [], []
    l_parts, r_parts, nl_parts, nr_parts = [], [], [], []
    for i, anchors in enumerate(anchors_list):
        N = anchors.shape[0]
        levels = np.ones(N, dtype=np.float32) * (i + 1)
        a = anchors[:, None].astype(np.float32)             # (N, 1)
        l_ann = ann[None, :, 0]                              # (1, M)
        r_ann = ann[None, :, 1]
        stride = 2 ** (i + 1)

        radius_lim = l_ann + RADIUS * stride
        in_radii = (a >= l_ann) & (a <= np.minimum(r_ann, radius_lim))
        l_star = a - l_ann                                   # (N, M)
        r_star = r_ann - a
        soi = np.array([sizes[i][0] * audio_target_rate,
                        sizes[i][1] * audio_target_rate], dtype=np.float32)
        max_t = np.maximum(l_star, r_star)
        in_range = (max_t >= soi[0]) & (max_t <= soi[1])

        areas = ann[:, 1] - ann[:, 0]
        gt_area = np.tile(areas[None, :], (N, 1)).astype(np.float32)
        gt_area[~in_radii] = INF
        gt_area[~in_range] = INF

        min_areas = gt_area.min(axis=1)
        argmin = gt_area.argmin(axis=1)
        assigned = ann[argmin].copy()
        assigned[min_areas == INF, 2] = 0
        norm_ann = assigned                                  # same tensor, as in the torch code
        norm_ann[:, 0] /= stride
        norm_ann[:, 1] /= stride

        l_s = l_star[np.arange(N), argmin]
        r_s = r_star[np.arange(N), argmin]

        pos_parts.append(argmin)
        norm_parts.append(norm_ann)
        l_parts.append(l_s)
        r_parts.append(r_s)
        nl_parts.append(l_s / stride)
        nr_parts.append(r_s / stride)
        lev_parts.append(levels)

    # NOTE: the torch reference does `indices.bool()` on argmin *indices*; reproduced
    # verbatim here to keep forward-pass semantics identical to the reference.
    pos = np.concatenate(pos_parts).astype(bool)
    return (pos,
            np.concatenate(norm_parts, axis=0),
            np.concatenate(l_parts), np.concatenate(r_parts),
            np.concatenate(nl_parts), np.concatenate(nr_parts),
            np.concatenate(lev_parts))


# ---------------------------------------------------------------------------
# FocalLoss module
# ---------------------------------------------------------------------------
class FocalLoss:
    def __init__(self, fcos=True):
        # TODO(synk): ATSS (fcos=False) assignment (topk + scatter) not ported — the
        # reference fcos=False path raises NameError at its return (levels undefined).
        self.fcos = fcos

    def forward(self, classifications, anchors_list, annotations, class_id,
                regress_limits=(0, float('inf'))):
        if class_id == -1:
            raise ValueError
        # Classifications stay on device (no host round trip of the big tensor).
        classifications = jnp.asarray(classifications, dtype=jnp.float32)
        B, A, C = classifications.shape
        # Only the small annotation / anchor arrays need host NumPy for assignment.
        ann_np = np.asarray(annotations, dtype=np.float32)
        anchors_np = [np.asarray(a, dtype=np.float32) for a in anchors_list]

        class_targets_all = np.zeros((B, A, C), dtype=np.int8)  # dense {0,1}; kernel pad uses -1
        num_pos = np.zeros((B,), dtype=np.float32)
        has_ann = np.zeros((B,), dtype=bool)
        class_targets_last = np.zeros((A, C), dtype=np.float32)
        positive_last = np.zeros((A,), dtype=bool)
        levels_last = np.zeros((A,), dtype=np.float32)

        for j in range(B):
            jth_ann = ann_np[j]
            jth_ann = jth_ann[jth_ann[:, 2] != -1]
            if jth_ann.shape[0] == 0:
                continue  # no-annotation branch: all-zero targets give the same formula
            has_ann[j] = True
            (pos_idx, norm_ann, _, _, _, _, levels) = get_fcos_positives_np(
                jth_ann, anchors_np, class_id)
            targets = np.zeros((A, C), dtype=np.int8)
            targets[pos_idx, :] = 0
            targets[pos_idx, norm_ann[pos_idx, 2].astype(np.int64)] = 1
            class_targets_all[j] = targets
            num_pos[j] = float(pos_idx.sum())
            class_targets_last = targets.astype(np.float32)
            positive_last = pos_idx
            levels_last = levels

        # Pallas hot path: lane-dense focal loss + reduction over (A, C) per sample.
        sums = focal_loss_sums(classifications, jnp.asarray(class_targets_all))  # (B,)

        # Normalization + batch mean stay on device.
        has_ann_d = jnp.asarray(has_ann)
        num_pos_d = jnp.asarray(num_pos, dtype=jnp.float32)
        losses = jnp.where(has_ann_d, sums / jnp.maximum(num_pos_d, 1.0), sums)
        loss = losses.mean(keepdims=True).astype(jnp.float32)  # shape (1,)
        return (loss,
                jnp.asarray(class_targets_last),
                jnp.asarray(positive_last),
                jnp.asarray(levels_last))


if __name__ == "__main__":
    key = jax.random.PRNGKey(0)
    B, C = 2, 4
    class_id = 1

    # 5 FCOS pyramid levels, strides 2,4,8,16,32; 1-D anchor points per level
    anchor_counts = [64, 32, 16, 8, 4]
    anchors_list = []
    for i, n in enumerate(anchor_counts):
        stride = 2 ** (i + 1)
        anchors_list.append(jnp.arange(n, dtype=jnp.float32) * stride + stride / 2.0)
    A = sum(anchor_counts)  # 124 anchors total

    classifications = jax.nn.sigmoid(
        jax.random.normal(key, (B, A, C), dtype=jnp.float32))

    # annotations: (B, M, 3) rows are [left, right, class]; class == -1 is padding
    annotations = jnp.asarray(
        [[[4.0, 20.0, 1.0],
          [30.0, 34.0, 1.0],
          [50.0, 90.0, 2.0],
          [-1.0, -1.0, -1.0]],
         [[10.0, 60.0, 1.0],
          [70.0, 75.0, 1.0],
          [100.0, 120.0, 0.0],
          [-1.0, -1.0, -1.0]]], dtype=jnp.float32)

    loss_fn = FocalLoss(fcos=True)
    loss, class_targets, positive_idx, levels = loss_fn.forward(
        classifications, anchors_list, annotations, class_id)
    jax.block_until_ready(loss)
    assert loss.shape == (1,) and np.isfinite(np.asarray(loss)).all()
    print("KERNEL_OK")
</pallas_src>

<mosaic_0001>
module attributes {stable_mosaic.version = 11 : i64} {
  func.func @_focal_sum_kernel(%arg0: i32, %arg1: i32, %arg2: memref<1x32x128xf32, #tpu.memory_space<vmem>>, %arg3: memref<1x32x128xi8, #tpu.memory_space<vmem>>, %arg4: memref<1x1x128xf32, #tpu.memory_space<vmem>>, %arg5: memref<8x128xf32, #tpu.memory_space<vmem>>) attributes {dimension_semantics = [#tpu.dimension_semantics<parallel>, #tpu.dimension_semantics<arbitrary>], iteration_bounds = array<i64: 2, 1>, scalar_prefetch = 0 : i64, scratch_operands = 1 : i64, tpu.core_type = #tpu.core_type<tc>, window_params = [{transform_indices = @transform_0, window_bounds = array<i64: 1, 32, 128>}, {transform_indices = @transform_1, window_bounds = array<i64: 1, 32, 128>}, {transform_indices = @transform_2, window_bounds = array<i64: 1, 1, 128>}]} {
    %c0_i32 = arith.constant 0 : i32
    %0 = arith.cmpi eq, %arg1, %c0_i32 : i32
    %1 = arith.extui %0 : i1 to i32
    %c0_i32_0 = arith.constant 0 : i32
    %2 = arith.cmpi ne, %1, %c0_i32_0 : i32
    scf.if %2 {
      %cst_21 = arith.constant 0.000000e+00 : f32
      %38 = vector.broadcast %cst_21 : f32 to vector<8x128xf32>
      %c0_22 = arith.constant 0 : index
      %c0_23 = arith.constant 0 : index
      %39 = vector.load %arg5[%c0_22, %c0_23] : memref<8x128xf32, #tpu.memory_space<vmem>>, vector<8x128xf32>
      tpu.vector_store %arg5[%c0_22, %c0_23], %38 {strides = array<i32>} : memref<8x128xf32, #tpu.memory_space<vmem>>, vector<8x128xf32>,
    } else {
    }
    %c0 = arith.constant 0 : index
    %c0_1 = arith.constant 0 : index
    %c0_2 = arith.constant 0 : index
    %3 = vector.load %arg3[%c0, %c0_1, %c0_2] : memref<1x32x128xi8, #tpu.memory_space<vmem>>, vector<1x32x128xi8>
    %4 = vector.shape_cast %3 : vector<1x32x128xi8> to vector<32x128xi8>
    %5 = arith.sitofp %4 : vector<32x128xi8> to vector<32x128xf32>
    %cst = arith.constant 1.000000e+00 : f32
    %6 = vector.broadcast %cst : f32 to vector<32x128xf32>
    %7 = arith.cmpf oeq, %5, %6 : vector<32x128xf32>
    %c0_3 = arith.constant 0 : index
    %c0_4 = arith.constant 0 : index
    %c0_5 = arith.constant 0 : index
    %8 = vector.load %arg2[%c0_3, %c0_4, %c0_5] : memref<1x32x128xf32, #tpu.memory_space<vmem>>, vector<1x32x128xf32>
    %9 = vector.shape_cast %8 : vector<1x32x128xf32> to vector<32x128xf32>
    %cst_6 = arith.constant 9.99999974E-5 : f32
    %cst_7 = arith.constant 0.999899983 : f32
    %10 = vector.broadcast %cst_6 : f32 to vector<32x128xf32>
    %11 = arith.maximumf %10, %9 : vector<32x128xf32>
    %12 = vector.broadcast %cst_7 : f32 to vector<32x128xf32>
    %13 = arith.minimumf %12, %11 : vector<32x128xf32>
    %cst_8 = arith.constant 1.000000e+00 : f32
    %14 = vector.broadcast %cst_8 : f32 to vector<32x128xf32>
    %15 = arith.subf %14, %13 : vector<32x128xf32>
    %16 = arith.select %7, %13, %15 : vector<32x128xi1>, vector<32x128xf32>
    %cst_9 = arith.constant -1.000000e+00 : f32
    %17 = vector.broadcast %cst_9 : f32 to vector<32x128xf32>
    %18 = arith.cmpf oeq, %5, %17 : vector<32x128xf32>
    %cst_10 = arith.constant 1.000000e+00 : f32
    %19 = vector.broadcast %cst_10 : f32 to vector<32x128xf32>
    %20 = arith.select %18, %19, %16 : vector<32x128xi1>, vector<32x128xf32>
    %cst_11 = arith.constant 1.000000e+00 : f32
    %21 = vector.broadcast %cst_11 : f32 to vector<32x128xf32>
    %22 = arith.subf %21, %20 : vector<32x128xf32>
    %cst_12 = arith.constant 2.500000e-01 : f32
    %cst_13 = arith.constant 7.500000e-01 : f32
    %23 = vector.broadcast %cst_12 : f32 to vector<32x128xf32>
    %24 = vector.broadcast %cst_13 : f32 to vector<32x128xf32>
    %25 = arith.select %7, %23, %24 : vector<32x128xi1>, vector<32x128xf32>
    %26 = arith.mulf %22, %22 : vector<32x128xf32>
    %27 = arith.mulf %25, %26 : vector<32x128xf32>
    %28 = math.log %20 : vector<32x128xf32>
    %29 = arith.mulf %27, %28 : vector<32x128xf32>
    %c0_14 = arith.constant 0 : index
    %c0_15 = arith.constant 0 : index
    %30 = vector.load %arg5[%c0_14, %c0_15] : memref<8x128xf32, #tpu.memory_space<vmem>>, vector<8x128xf32>
    %31 = vector.shape_cast %29 : vector<32x128xf32> to vector<4x8x128xf32>
    %cst_16 = arith.constant dense<0.000000e+00> : vector<8x128xf32>
    %32 = vector.multi_reduction <add>, %31, %cst_16 [0] : vector<4x8x128xf32> to vector<8x128xf32>
    %33 = arith.subf %30, %32 : vector<8x128xf32>
    %c0_17 = arith.constant 0 : index
    %c0_18 = arith.constant 0 : index
    %34 = vector.load %arg5[%c0_17, %c0_18] : memref<8x128xf32, #tpu.memory_space<vmem>>, vector<8x128xf32>
    tpu.vector_store %arg5[%c0_17, %c0_18], %33 {strides = array<i32>} : memref<8x128xf32, #tpu.memory_space<vmem>>, vector<8x128xf32>,
    %c0_i32_19 = arith.constant 0 : i32
    %35 = arith.cmpi eq, %arg1, %c0_i32_19 : i32
    %36 = arith.extui %35 : i1 to i32
    %c0_i32_20 = arith.constant 0 : i32
    %37 = arith.cmpi ne, %36, %c0_i32_20 : i32
    scf.if %37 {
      %c0_21 = arith.constant 0 : index
      %c0_22 = arith.constant 0 : index
      %38 = vector.load %arg5[%c0_21, %c0_22] : memref<8x128xf32, #tpu.memory_space<vmem>>, vector<8x128xf32>
      %39 = vector.shape_cast %38 : vector<8x128xf32> to vector<1x8x128xf32>
      %cst_23 = arith.constant dense<0.000000e+00> : vector<1xf32>
      %40 = vector.multi_reduction <add>, %39, %cst_23 [1, 2] : vector<1x8x128xf32> to vector<1xf32>
      %41 = vector.shape_cast %40 : vector<1xf32> to vector<1x1x1xf32>
      %42 = vector.extract %41[0, 0, 0] : f32 from vector<1x1x1xf32>
      %43 = vector.broadcast %42 : f32 to vector<1x1x128xf32>
      %c0_24 = arith.constant 0 : index
      %c0_25 = arith.constant 0 : index
      %c0_26 = arith.constant 0 : index
      %44 = vector.load %arg4[%c0_24, %c0_25, %c0_26] : memref<1x1x128xf32, #tpu.memory_space<vmem>>, vector<1x1x128xf32>
      tpu.vector_store %arg4[%c0_24, %c0_25, %c0_26], %43 {strides = array<i32>} : memref<1x1x128xf32, #tpu.memory_space<vmem>>, vector<1x1x128xf32>,
    } else {
    }
    return
  }
  func.func @transform_0(%arg0: i32, %arg1: i32) -> (i32, i32, i32) {
    %c0_i32 = arith.constant 0 : i32
    %c0_i32_0 = arith.constant 0 : i32
    return %arg0, %arg1, %c0_i32 : i32, i32, i32
  }
  func.func @transform_1(%arg0: i32, %arg1: i32) -> (i32, i32, i32) {
    %c0_i32 = arith.constant 0 : i32
    %c0_i32_0 = arith.constant 0 : i32
    return %arg0, %arg1, %c0_i32 : i32, i32, i32
  }
  func.func @transform_2(%arg0: i32, %arg1: i32) -> (i32, i32, i32) {
    %c0_i32 = arith.constant 0 : i32
    %c0_i32_0 = arith.constant 0 : i32
    %c0_i32_1 = arith.constant 0 : i32
    return %arg0, %c0_i32, %c0_i32_0 : i32, i32, i32
  }
}

</mosaic_0001>

<llo_original>
// kernel: tpu_custom_call.1
$region0: #{tpu_custom_call.1}
  #allocation0 [shape = 'u32[]', space=smem, size = 0x4, offset = 0x4, fixed_abs, tag = 'smem constant byte address 0x4 - core index']
  #allocation1 [shape = 'u32[144,128]{1,0:T(1,128)}', space=vmem, size = 0x12000, scoped, tag = 'internal scratch']
  #allocation2 [shape = 'f32[8,128]{1,0:T(8,128)}', space=vmem, size = 0x1000, scoped, tag = 'scratch operand']
  %s0 = inlined_call_operand.hbm [shape: f32[2,32,128], index: 0, kind: input, shape index: {}]
  %s1 = inlined_call_operand.hbm [shape: s8[2,32,128], index: 1, kind: input, shape index: {}]
  %s2 = inlined_call_operand.hbm [shape: f32[2,1,128], index: 2, kind: output, shape index: {}]
  %s3 = sld [smem:[#allocation0]]
  $region57: #{tpu_custom_call.1} parent=0
    _
  %s5 = ssub.s32 1, %s3
  %s6 = scalar_select 0, %s5, %s3
  $region1: #{tpu_custom_call.1} parent=0
    #allocation3 [shape = 'u8[32768]{0}', space=vmem, size = 0x8000, scoped, tag = 'input window, operand 0']
    #allocation4 [shape = 's32[2]{0}', space=sflag, size = 0x8, scoped, tag = 'scoped memory for tpu_custom_call.1']
    #allocation5 [shape = 's32[2]{0}', space=sflag, size = 0x8, scoped, tag = 'scoped memory for tpu_custom_call.1']
    #allocation6 [shape = 'u8[8192]{0}', space=vmem, size = 0x2000, scoped, tag = 'input window, operand 1']
    #allocation7 [shape = 's32[2]{0}', space=sflag, size = 0x8, scoped, tag = 'scoped memory for tpu_custom_call.1']
    #allocation8 [shape = 'u8[1024]{0}', space=vmem, size = 0x400, scoped, tag = 'output window, operand 0']
    %7 = vsyncpa [#allocation4], 0
    %s8 = scalar_lea.sflag [#allocation4], 1
    %9 = vsyncpa %s8, 0
    %10 = vsyncpa [#allocation7], 0
    %s11 = scalar_lea.sflag [#allocation7], 1
    %12 = vsyncpa %s11, 0
    %13 = vsyncpa [#allocation5], 0
    %s14 = scalar_lea.sflag [#allocation5], 1
    %15 = vsyncpa %s14, 0
    loop: start=0, step=1, limit=4
    $region2: #{tpu_custom_call.1} parent=1 // loop_pre_header
      _
    $region3: #{tpu_custom_call.1} parent=1 // loop_header
      %s17 = sphi 0, %s21
      %p18 = scmp.ge.s32.totalorder %s17, 4
      %s24 = sphi 0, %s36
      %s25 = sphi 0, %s32
      %s26 = sphi 0, %s24
      %s27 = sphi 0, %s25
      %s28 = sphi 0, %s26
      %s29 = sphi 0, %s27
      %s41 = sphi 0, %s43
      %s44 = sphi 0, %s41
      %s45 = sphi 0, %s44
      %s61 = sphi 0, %s45
      %s69 = sphi 0, %s71
      %s72 = sphi 0, %s69
      %s73 = sphi 0, %s72
      %s89 = sphi 0, %s73
      %s95 = sphi 0, %s97
      %s98 = sphi 0, %s95
      %s99 = sphi 0, %s98
      %s115 = sphi 0, %s99
    $region4: #{tpu_custom_call.1} parent=1 // loop_header_branch
      %20 = sbr.rel (%p18) target = $region8
    $region5: #{tpu_custom_call.1} parent=1 // loop_body
      %s22 = ssub.s32 %s17, 1
      %s23 = ssub.s32 %s17, 2
      %s30 = sadd.s32 1, %s25
      %p31 = scmp.ge.s32.totalorder %s30, 1
      %s32 = scalar_select %p31, 0, %s30
      %s33 = sadd.s32 1, %s24
      %s34 = scalar_select %p31, %s33, %s24
      %p35 = scmp.ge.s32.totalorder %s34, 2
      %s36 = scalar_select %p35, 0, %s34
      %s37 = ssub.s32 %s24, %s36
      %s38 = ssub.s32 %s25, %s32
      %s39 = sor.u32 %s37, %s38
      %p40 = scmp.eq.s32.totalorder %s39, 0
      %s42 = sadd.s32 %s41, 1
      %s43 = scalar_select %p40, %s41, %s42
      %p46 = pneg %p40
      %p47 = scmp.eq.s32.totalorder %s17, 1
      %p48 = por %p46, %p47
      %p49 = scmp.ne.s32.totalorder %s41, %s44
      %p50 = scmp.eq.s32.totalorder %s17, 0
      %p51 = por %p49, %p50
      %p52 = scmp.ne.s32.totalorder %s41, %s44
      %p53 = scmp.eq.s32.totalorder %s22, 1
      %p54 = por %p52, %p53
      %p55 = scmp.ne.s32.totalorder %s44, %s45
      %p56 = scmp.eq.s32.totalorder %s22, 0
      %p57 = por %p55, %p56
      %p58 = scmp.ne.s32.totalorder %s44, %s45
      %p59 = scmp.eq.s32.totalorder %s23, 1
      %p60 = por %p58, %p59
      %p62 = scmp.ne.s32.totalorder %s45, %s61
      %p63 = scmp.eq.s32.totalorder %s23, 0
      %p64 = por %p62, %p63
      %s65 = ssub.s32 %s24, %s36
      %s66 = ssub.s32 %s25, %s32
      %s67 = sor.u32 %s65, %s66
      %p68 = scmp.eq.s32.totalorder %s67, 0
      %s70 = sadd.s32 %s69, 1
      %s71 = scalar_select %p68, %s69, %s70
      %p74 = pneg %p68
      %p75 = scmp.eq.s32.totalorder %s17, 1
      %p76 = por %p74, %p75
      %p77 = scmp.ne.s32.totalorder %s69, %s72
      %p78 = scmp.eq.s32.totalorder %s17, 0
      %p79 = por %p77, %p78
      %p80 = scmp.ne.s32.totalorder %s69, %s72
      %p81 = scmp.eq.s32.totalorder %s22, 1
      %p82 = por %p80, %p81
      %p83 = scmp.ne.s32.totalorder %s72, %s73
      %p84 = scmp.eq.s32.totalorder %s22, 0
      %p85 = por %p83, %p84
      %p86 = scmp.ne.s32.totalorder %s72, %s73
      %p87 = scmp.eq.s32.totalorder %s23, 1
      %p88 = por %p86, %p87
      %p90 = scmp.ne.s32.totalorder %s73, %s89
      %p91 = scmp.eq.s32.totalorder %s23, 0
      %p92 = por %p90, %p91
      %s93 = ssub.s32 %s24, %s36
      %p94 = scmp.eq.s32.totalorder %s93, 0
      %s96 = sadd.s32 %s95, 1
      %s97 = scalar_select %p94, %s95, %s96
      %p100 = pneg %p94
      %p101 = scmp.eq.s32.totalorder %s17, 1
      %p102 = por %p100, %p101
      %p103 = scmp.ne.s32.totalorder %s95, %s98
      %p104 = scmp.eq.s32.totalorder %s17, 0
      %p105 = por %p103, %p104
      %p106 = scmp.ne.s32.totalorder %s95, %s98
      %p107 = scmp.eq.s32.totalorder %s22, 1
      %p108 = por %p106, %p107
      %p109 = scmp.ne.s32.totalorder %s98, %s99
      %p110 = scmp.eq.s32.totalorder %s22, 0
      %p111 = por %p109, %p110
      %p112 = scmp.ne.s32.totalorder %s98, %s99
      %p113 = scmp.eq.s32.totalorder %s23, 1
      %p114 = por %p112, %p113
      %p116 = scmp.ne.s32.totalorder %s99, %s115
      %p117 = scmp.eq.s32.totalorder %s23, 0
      %p118 = por %p116, %p117
      %p119 = scmp.le.s32.totalorder 1, %s17
      %p120 = scmp.lt.s32.totalorder %s17, 3
      %p121 = pnand %p119, %p120
      %p122 = pneg %p121
      // Predicated region
      $region9: #{tpu_custom_call.1} parent=5 // pred_check
        _
      $region10: #{tpu_custom_call.1} parent=5 // pred_check_branch
        %124 = sbr.rel (%p121) target = $region12
      $region11: #{tpu_custom_call.1} parent=5 // pred_region
        %s125 = ssub.s32 %s17, 1
      $region12: #{tpu_custom_call.1} parent=5 // pred_fallthru
        _
      %p126 = scmp.lt.s32.totalorder %s17, 2
      // Predicated region
      $region13: #{tpu_custom_call.1} parent=5 // pred_check
        %p127 = pneg %p126
      $region14: #{tpu_custom_call.1} parent=5 // pred_check_branch
        %129 = sbr.rel (%p127) target = $region16
      $region15: #{tpu_custom_call.1} parent=5 // pred_region
        // Predicated region
        $region17: #{tpu_custom_call.1} parent=15 // pred_check
          %p130 = pneg %p51
        $region18: #{tpu_custom_call.1} parent=15 // pred_check_branch
          %132 = sbr.rel (%p130) target = $region20
        $region19: #{tpu_custom_call.1} parent=15 // pred_region
          %s133 = sand.u32 %s41, 1
          %s134 = scalar_lea.sflag [#allocation4], %s133
          %s135 = sand.u32 %s41, 1
          %s136 = smul.addr %s135, 32
          %s137 = scalar_lea.vmem [#allocation3], %s136
          %s138 = smul.u32 4, %s25
          %s140 = ssub.s32 512, 512
          %141 = vsyncadd %s134, %s140
          %s142 = smul.addr %s24, 4
          %s143 = sadd.s32 %s138, %s142
          %s144 = smul.addr %s143, 128
          %s145 = scalar_lea.hbm %s0, %s144
          %s146 = sshll.u32 %s137, 4
          %s147 = int_to_ptr.vmem [resolvable:$true] %s146
          %152 = dma.hbm_to_vmem [thread:$0]  %s145, 512, %s147, %s134, 128, 128, 8
        $region20: #{tpu_custom_call.1} parent=15 // pred_fallthru
          _
        // Predicated region
        $region21: #{tpu_custom_call.1} parent=15 // pred_check
          %p153 = pneg %p79
        $region22: #{tpu_custom_call.1} parent=15 // pred_check_branch
          %155 = sbr.rel (%p153) target = $region24
        $region23: #{tpu_custom_call.1} parent=15 // pred_region
          %s156 = sand.u32 %s69, 1
          %s157 = scalar_lea.sflag [#allocation7], %s156
          %s158 = sand.u32 %s69, 1
          %s159 = smul.addr %s158, 8
          %s160 = scalar_lea.vmem [#allocation6], %s159
          %s162 = ssub.s32 128, 128
          %163 = vsyncadd %s157, %s162
          %s164 = sadd.s32 %s25, %s24
          %s165 = smul.addr %s164, 128
          %s166 = scalar_lea.hbm %s1, %s165
          %s168 = sshll.u32 %s160, 4
          %s169 = int_to_ptr.vmem [resolvable:$true] %s168
          %171 = dma.hbm_to_vmem [thread:$0]  %s166, 128, %s169, %s157
        $region24: #{tpu_custom_call.1} parent=15 // pred_fallthru
          _
      $region16: #{tpu_custom_call.1} parent=5 // pred_fallthru
        _
      %p172 = scmp.le.s32.totalorder 1, %s17
      %p173 = scmp.lt.s32.totalorder %s17, 3
      %p174 = pnand %p172, %p173
      %p175 = pneg %p174
      // Predicated region
      $region25: #{tpu_custom_call.1} parent=5 // pred_check
        _
      $region26: #{tpu_custom_call.1} parent=5 // pred_check_branch
        %177 = sbr.rel (%p174) target = $region28
      $region27: #{tpu_custom_call.1} parent=5 // pred_region
        %s178 = ssub.s32 %s17, 1
        %s179 = sand.u32 %s44, 1
        %s180 = scalar_lea.sflag [#allocation4], %s179
        %s181 = sand.u32 %s44, 1
        %s182 = smul.addr %s181, 32
        %s183 = scalar_lea.vmem [#allocation3], %s182
        // Predicated region
        $region29: #{tpu_custom_call.1} parent=27 // pred_check
          %p184 = pneg %p57
        $region30: #{tpu_custom_call.1} parent=27 // pred_check_branch
          %186 = sbr.rel (%p184) target = $region32
        $region31: #{tpu_custom_call.1} parent=27 // pred_region
          %187 = dma.done %s180, 512
        $region32: #{tpu_custom_call.1} parent=27 // pred_fallthru
          _
        %s188 = sand.u32 %s72, 1
        %s189 = scalar_lea.sflag [#allocation7], %s188
        %s190 = sand.u32 %s72, 1
        %s191 = smul.addr %s190, 8
        %s192 = scalar_lea.vmem [#allocation6], %s191
        // Predicated region
        $region33: #{tpu_custom_call.1} parent=27 // pred_check
          %p193 = pneg %p85
        $region34: #{tpu_custom_call.1} parent=27 // pred_check_branch
          %195 = sbr.rel (%p193) target = $region36
        $region35: #{tpu_custom_call.1} parent=27 // pred_region
          %196 = dma.done %s189, 128
        $region36: #{tpu_custom_call.1} parent=27 // pred_fallthru
          _
        %s197 = sand.u32 %s44, 1
        %s198 = scalar_lea.sflag [#allocation4], %s197
        %s199 = sand.u32 %s44, 1
        %s200 = smul.addr %s199, 32
        %s201 = scalar_lea.vmem [#allocation3], %s200
        %p202 = pneg %p57
        %p203 = pneg %p54
        %s204 = sand.u32 %s72, 1
        %s205 = scalar_lea.sflag [#allocation7], %s204
        %s206 = sand.u32 %s72, 1
        %s207 = smul.addr %s206, 8
        %s208 = scalar_lea.vmem [#allocation6], %s207
        %p209 = pneg %p85
        %p210 = pneg %p82
        %p211 = pneg %p111
        %p212 = pneg %p108
        %s213 = sand.u32 %s98, 1
        %s214 = scalar_lea.sflag [#allocation5], %s213
        %s215 = sand.u32 %s98, 1
        %s216 = scalar_lea.vmem [#allocation8], %s215
        %s217 = smul.u32 4, %s27
        %p218 = scmp.eq.s32.totalorder %s27, 0
        // Predicated region
        $region37: #{tpu_custom_call.1} parent=27 // pred_check
          %p219 = pneg %p218
        $region38: #{tpu_custom_call.1} parent=27 // pred_check_branch
          %221 = sbr.rel (%p219) target = $region40
        $region39: #{tpu_custom_call.1} parent=27 // pred_region
          %222 = vst [vmem:[#allocation2] sm:$0xff] 0.0
        $region40: #{tpu_custom_call.1} parent=27 // pred_fallthru
          _
        %v223 = vld [vmem:[%s192] sm:$0xff]
        %v224 = vunpack.c.0.s8 %v223
        %v225 = vunpack.c.1.s8 %v223
        %v226 = vunpack.c.2.s8 %v223
        %v227 = vunpack.c.3.s8 %v223
        %v228 = vcvt.s32.f32 %v224
        %v229 = vcvt.s32.f32 %v225
        %v230 = vcvt.s32.f32 %v226
        %v231 = vcvt.s32.f32 %v227
        %vm232 = vcmp.eq.f32.partialorder %v228, 1.0
        %vm233 = vcmp.eq.f32.partialorder %v229, 1.0
        %vm234 = vcmp.eq.f32.partialorder %v230, 1.0
        %vm235 = vcmp.eq.f32.partialorder %v231, 1.0
        %v236 = vld [vmem:[%s183] sm:$0xff]
        %v237 = vld [vmem:[%s183 + $0x8] sm:$0xff]
        %v238 = vld [vmem:[%s183 + $0x10] sm:$0xff]
        %v239 = vld [vmem:[%s183 + $0x18] sm:$0xff]
        %v240 = vmax.f32 %v236, 0.0001
        %v241 = vmax.f32 %v237, 0.0001
        %v242 = vmax.f32 %v238, 0.0001
        %v243 = vmax.f32 %v239, 0.0001
        %v244 = vmin.f32 %v240, 0.9999
        %v245 = vmin.f32 %v241, 0.9999
        %v246 = vmin.f32 %v242, 0.9999
        %v247 = vmin.f32 %v243, 0.9999
        %v248 = vsub.f32 1.0, %v244
        %v249 = vsub.f32 1.0, %v245
        %v250 = vsub.f32 1.0, %v246
        %v251 = vsub.f32 1.0, %v247
        %v252 = vsel %vm232, %v244, %v248
        %v253 = vsel %vm233, %v245, %v249
        %v254 = vsel %vm234, %v246, %v250
        %v255 = vsel %vm235, %v247, %v251
        %vm256 = vcmp.eq.f32.partialorder %v228, -1.0
        %vm257 = vcmp.eq.f32.partialorder %v229, -1.0
        %vm258 = vcmp.eq.f32.partialorder %v230, -1.0
        %vm259 = vcmp.eq.f32.partialorder %v231, -1.0
        %v260 = vsel %vm256, 1.0, %v252
        %v261 = vsel %vm257, 1.0, %v253
        %v262 = vsel %vm258, 1.0, %v254
        %v263 = vsel %vm259, 1.0, %v255
        %v264 = vsub.f32 1.0, %v260
        %v265 = vsub.f32 1.0, %v261
        %v266 = vsub.f32 1.0, %v262
        %v267 = vsub.f32 1.0, %v263
        %v268 = vsel %vm232, 0.25, 0.75
        %v269 = vsel %vm233, 0.25, 0.75
        %v270 = vsel %vm234, 0.25, 0.75
        %v271 = vsel %vm235, 0.25, 0.75
        %v272 = vmul.f32 %v264, %v264
        %v273 = vmul.f32 %v265, %v265
        %v274 = vmul.f32 %v266, %v266
        %v275 = vmul.f32 %v267, %v267
        %v276 = vmul.f32 %v268, %v272
        %v277 = vmul.f32 %v269, %v273
        %v278 = vmul.f32 %v270, %v274
        %v279 = vmul.f32 %v271, %v275
        %v280 = vlog2.pop %v260
        %v281 = vmul.f32 %v280, 0.6931472
        %v282 = vlog2.pop %v261
        %v283 = vmul.f32 %v282, 0.6931472
        %v284 = vlog2.pop %v262
        %v285 = vmul.f32 %v284, 0.6931472
        %v286 = vlog2.pop %v263
        %v287 = vmul.f32 %v286, 0.6931472
        %v288 = vmul.f32 %v276, %v281
        %v289 = vmul.f32 %v277, %v283
        %v290 = vmul.f32 %v278, %v285
        %v291 = vmul.f32 %v279, %v287
        %v292 = vld [vmem:[#allocation2] sm:$0xff]
        %v293 = vadd.f32 %v288, %v289
        %v294 = vadd.f32 %v293, %v290
        %v295 = vadd.f32 %v294, %v291
        %v296 = vsub.f32 %v292, %v295
        %297 = vst [vmem:[#allocation2] sm:$0xff] %v296
        // Predicated region
        $region41: #{tpu_custom_call.1} parent=27 // pred_check
          %p298 = pneg %p218
        $region42: #{tpu_custom_call.1} parent=27 // pred_check_branch
          %300 = sbr.rel (%p298) target = $region44
        $region43: #{tpu_custom_call.1} parent=27 // pred_region
          %v301 = vld [vmem:[#allocation2] sm:$0xff]
          %302 = vadd.xlane.f32.xlu0 %v301
          %v303 = vpop.xlane.xlu0 %302
          %v304 = vrot.slane %v303, 4
          %v305 = vadd.f32 %v303, %v304
          %v306 = vrot.slane %v305, 2
          %v307 = vadd.f32 %v305, %v306
          %v308 = vrot.slane %v307, 1
          %v309 = vadd.f32 %v307, %v308
          %s310 = vtos %v309
          %v311 = vstv %s310
          %312 = vst [vmem:[%s216] sm:$0x1] %v311
        $region44: #{tpu_custom_call.1} parent=27 // pred_fallthru
          _
        %s313 = sand.u32 %s98, 1
        %s314 = scalar_lea.sflag [#allocation5], %s313
        %s315 = sand.u32 %s98, 1
        %s316 = scalar_lea.vmem [#allocation8], %s315
        // Predicated region
        $region45: #{tpu_custom_call.1} parent=27 // pred_check
          %p317 = pneg %p108
        $region46: #{tpu_custom_call.1} parent=27 // pred_check_branch
          %319 = sbr.rel (%p317) target = $region48
        $region47: #{tpu_custom_call.1} parent=27 // pred_region
          %s321 = ssub.s32 16, 16
          %322 = vsyncadd %s314, %s321
          %s323 = smul.addr %s26, 16
          %s324 = scalar_lea.hbm %s2, %s323
          %s326 = sshll.u32 %s316, 4
          %s327 = int_to_ptr.vmem [resolvable:$true] %s326
          %329 = dma.vmem_to_hbm [thread:$0]  %s327, 16, %s324, %s314
        $region48: #{tpu_custom_call.1} parent=27 // pred_fallthru
          _
      $region28: #{tpu_custom_call.1} parent=5 // pred_fallthru
        _
      %p330 = scmp.le.s32.totalorder 2, %s17
      // Predicated region
      $region49: #{tpu_custom_call.1} parent=5 // pred_check
        %p331 = pneg %p330
      $region50: #{tpu_custom_call.1} parent=5 // pred_check_branch
        %333 = sbr.rel (%p331) target = $region52
      $region51: #{tpu_custom_call.1} parent=5 // pred_region
        %s334 = ssub.s32 %s17, 2
        // Predicated region
        $region53: #{tpu_custom_call.1} parent=51 // pred_check
          %p335 = pneg %p114
        $region54: #{tpu_custom_call.1} parent=51 // pred_check_branch
          %337 = sbr.rel (%p335) target = $region56
        $region55: #{tpu_custom_call.1} parent=51 // pred_region
          %s338 = sand.u32 %s99, 1
          %s339 = scalar_lea.sflag [#allocation5], %s338
          %s340 = sand.u32 %s99, 1
          %s341 = scalar_lea.vmem [#allocation8], %s340
          %342 = dma.done %s339, 16
        $region56: #{tpu_custom_call.1} parent=51 // pred_fallthru
          _
      $region52: #{tpu_custom_call.1} parent=5 // pred_fallthru
        _
    $region6: #{tpu_custom_call.1} parent=1 // loop_footer
      %s21 = sadd.s32 1, %s17
    $region7: #{tpu_custom_call.1} parent=1 // loop_footer_branch
      %16 = sbr.rel target = $region3
    $region8: #{tpu_custom_call.1} parent=1 // loop_exit
      _
    %343 = vsyncpa [#allocation4], 1
    %s344 = scalar_lea.sflag [#allocation4], 1
    %345 = vsyncpa %s344, 1
    %346 = vsyncpa [#allocation7], 1
    %s347 = scalar_lea.sflag [#allocation7], 1
    %348 = vsyncpa %s347, 1
    %349 = vsyncpa [#allocation5], 1
    %s350 = scalar_lea.sflag [#allocation5], 1
    %351 = vsyncpa %s350, 1

</llo_original>
